<compile_context>
chip_gen: v6e
topology: v6e:2x2x1
jax: 0.10.0
libtpu: 0.0.40
codegen_flags: <defaults>
</compile_context>

<pallas_src>
import functools

import jax
import jax.numpy as jnp
from jax.experimental import pallas as pl
from jax.experimental.pallas import tpu as pltpu

LN_EPS = 1e-5


def _round_up(x, m):
    return (x + m - 1) // m * m


def _transition_kernel(s_ref, w1_ref, b1_ref, w2_ref, b2_ref, w3_ref, b3_ref,
                       ln_w_ref, ln_b_ref, o_ref, *, num_layers):
    # Activations stay f32; only the MXU operands are cast to bf16
    # (weights arrive already cast to bf16 from the wrapper).
    s = s_ref[...].astype(jnp.float32)

    # num_layers is small -> static unroll.
    for l in range(num_layers):
        s_initial = s
        h = jnp.dot(s.astype(jnp.bfloat16), w1_ref[l],
                    preferred_element_type=jnp.float32) + b1_ref[l]
        h = jnp.maximum(h, 0.0)
        h = jnp.dot(h.astype(jnp.bfloat16), w2_ref[l],
                    preferred_element_type=jnp.float32) + b2_ref[l]
        h = jnp.maximum(h, 0.0)
        h = jnp.dot(h.astype(jnp.bfloat16), w3_ref[l],
                    preferred_element_type=jnp.float32) + b3_ref[l]
        s = h + s_initial

    # Dropout is identity in eval mode.
    # TODO(synk): training-mode dropout (random mask + 1/(1-p) scaling) not implemented.

    # LayerNorm over the channel (last) dim, computed as sums scaled by 1/c.
    inv_c = 1.0 / s.shape[-1]
    mean = jnp.sum(s, axis=-1, keepdims=True) * inv_c
    centered = s - mean
    var = jnp.sum(centered * centered, axis=-1, keepdims=True) * inv_c
    normed = centered * jax.lax.rsqrt(var + LN_EPS)
    out = normed * ln_w_ref[...] + ln_b_ref[...]

    o_ref[...] = out.astype(o_ref.dtype)


def structure_module_transition(s, params, *, row_tile=512):
    """s: [N_rows, c] float32.  params: dict of stacked, [c_in, c_out] weights."""
    n_rows, c = s.shape
    num_layers = params["w1"].shape[0]

    # Effective row tile: multiple of 8, no larger than the (8-aligned) problem.
    tm = max(8, min(_round_up(row_tile, 8), _round_up(n_rows, 8)))

    # Remainder handling: zero-pad rows up to a multiple of the tile.
    n_pad = _round_up(n_rows, tm)
    if n_pad != n_rows:
        s = jnp.pad(s, ((0, n_pad - n_rows), (0, 0)))

    # Cast weights to bf16 once on the host side of the kernel (halves weight
    # bytes in HBM/VMEM and feeds the MXU at its native rate). Biases and LN
    # params stay f32 so all elementwise math is f32.
    w1 = params["w1"].astype(jnp.bfloat16)
    w2 = params["w2"].astype(jnp.bfloat16)
    w3 = params["w3"].astype(jnp.bfloat16)

    kernel = functools.partial(_transition_kernel, num_layers=num_layers)

    grid = (pl.cdiv(n_pad, tm),)

    # Grid-invariant blocks (constant index_map) -> loaded once, VMEM-resident.
    w_spec = pl.BlockSpec((num_layers, c, c), lambda i: (0, 0, 0))
    b_spec = pl.BlockSpec((num_layers, c), lambda i: (0, 0))
    ln_spec = pl.BlockSpec((1, c), lambda i: (0, 0))
    s_spec = pl.BlockSpec((tm, c), lambda i: (i, 0))

    out = pl.pallas_call(
        kernel,
        out_shape=jax.ShapeDtypeStruct((n_pad, c), s.dtype),
        grid_spec=pltpu.PrefetchScalarGridSpec(
            num_scalar_prefetch=0,
            grid=grid,
            in_specs=[
                s_spec,
                w_spec, b_spec,   # linear_1
                w_spec, b_spec,   # linear_2
                w_spec, b_spec,   # linear_3
                ln_spec, ln_spec,  # layer_norm weight / bias
            ],
            out_specs=s_spec,
        ),
        compiler_params=pltpu.CompilerParams(
            dimension_semantics=("parallel",),
            vmem_limit_bytes=48 * 1024 * 1024,
        ),
    )(s, w1, params["b1"], w2, params["b2"], w3, params["b3"],
      params["ln_w"], params["ln_b"])

    return out[:n_rows]


def make_params(key, c, num_layers):
    """Deterministic synthetic parameters (stacked across layers, [c_in, c_out])."""
    keys = jax.random.split(key, 6)
    scale = 1.0 / jnp.sqrt(jnp.float32(c))
    # Note: the reference 'final' init zeros linear_3; we use small random
    # weights everywhere so the kernel path is actually exercised.
    return {
        "w1": jax.random.normal(keys[0], (num_layers, c, c), jnp.float32) * scale,
        "b1": jax.random.normal(keys[1], (num_layers, c), jnp.float32) * 0.1,
        "w2": jax.random.normal(keys[2], (num_layers, c, c), jnp.float32) * scale,
        "b2": jax.random.normal(keys[3], (num_layers, c), jnp.float32) * 0.1,
        "w3": jax.random.normal(keys[4], (num_layers, c, c), jnp.float32) * scale,
        "b3": jax.random.normal(keys[5], (num_layers, c), jnp.float32) * 0.1,
        "ln_w": jnp.ones((1, c), jnp.float32),
        "ln_b": jnp.zeros((1, c), jnp.float32),
    }


def reference_forward(s, params):
    """Pure-JAX f32 reference mirroring the PyTorch module (eval mode)."""
    num_layers = params["w1"].shape[0]
    for l in range(num_layers):
        s0 = s
        h = jnp.maximum(s @ params["w1"][l] + params["b1"][l], 0.0)
        h = jnp.maximum(h @ params["w2"][l] + params["b2"][l], 0.0)
        h = h @ params["w3"][l] + params["b3"][l]
        s = h + s0
    mean = jnp.mean(s, axis=-1, keepdims=True)
    var = jnp.mean((s - mean) ** 2, axis=-1, keepdims=True)
    s = (s - mean) * jax.lax.rsqrt(var + LN_EPS)
    return s * params["ln_w"] + params["ln_b"]


if __name__ == "__main__":
    # Small demo shapes. c=128 keeps the channel dim lane-dense (production
    # structure-module widths like 384 are also >=128).
    # TODO(synk): for c < 128, pack rows wrapper-side into a lane-dense
    # (n_rows/k, k*c) I/O slab to avoid masked partial stores.
    c = 128
    num_layers = 2
    batch, seq = 2, 8            # -> 16 rows

    key = jax.random.PRNGKey(0)
    k_s, k_p = jax.random.split(key)
    s_in = jax.random.normal(k_s, (batch, seq, c), jnp.float32)
    params = make_params(k_p, c, num_layers)

    s_rows = s_in.reshape(batch * seq, c)       # [N_rows, c], feature-last
    out_rows = structure_module_transition(s_rows, params, row_tile=512)
    out = out_rows.reshape(batch, seq, c)
    out = jax.block_until_ready(out)

    ref = reference_forward(s_rows, params).reshape(batch, seq, c)
    # bf16 MXU matmuls with f32 accumulation -> compare with a looser tolerance.
    assert jnp.allclose(out, ref, atol=5e-2, rtol=5e-2), "mismatch vs reference"

    print("KERNEL_OK")
</pallas_src>

<mosaic_0001>
module attributes {stable_mosaic.version = 11 : i64} {
  func.func @_transition_kernel(%arg0: i32, %arg1: memref<16x128xf32, #tpu.memory_space<vmem>>, %arg2: memref<2x128x128xbf16, #tpu.memory_space<vmem>>, %arg3: memref<2x128xf32, #tpu.memory_space<vmem>>, %arg4: memref<2x128x128xbf16, #tpu.memory_space<vmem>>, %arg5: memref<2x128xf32, #tpu.memory_space<vmem>>, %arg6: memref<2x128x128xbf16, #tpu.memory_space<vmem>>, %arg7: memref<2x128xf32, #tpu.memory_space<vmem>>, %arg8: memref<1x128xf32, #tpu.memory_space<vmem>>, %arg9: memref<1x128xf32, #tpu.memory_space<vmem>>, %arg10: memref<16x128xf32, #tpu.memory_space<vmem>>) attributes {dimension_semantics = [#tpu.dimension_semantics<parallel>], iteration_bounds = array<i64: 1>, scalar_prefetch = 0 : i64, scratch_operands = 0 : i64, tpu.core_type = #tpu.core_type<tc>, window_params = [{transform_indices = @transform_0, window_bounds = array<i64: 16, 128>}, {pipeline_mode = #tpu.pipeline_mode<synchronous>, transform_indices = @transform_1, window_bounds = array<i64: 2, 128, 128>}, {pipeline_mode = #tpu.pipeline_mode<synchronous>, transform_indices = @transform_2, window_bounds = array<i64: 2, 128>}, {pipeline_mode = #tpu.pipeline_mode<synchronous>, transform_indices = @transform_3, window_bounds = array<i64: 2, 128, 128>}, {pipeline_mode = #tpu.pipeline_mode<synchronous>, transform_indices = @transform_4, window_bounds = array<i64: 2, 128>}, {pipeline_mode = #tpu.pipeline_mode<synchronous>, transform_indices = @transform_5, window_bounds = array<i64: 2, 128, 128>}, {pipeline_mode = #tpu.pipeline_mode<synchronous>, transform_indices = @transform_6, window_bounds = array<i64: 2, 128>}, {pipeline_mode = #tpu.pipeline_mode<synchronous>, transform_indices = @transform_7, window_bounds = array<i64: 1, 128>}, {pipeline_mode = #tpu.pipeline_mode<synchronous>, transform_indices = @transform_8, window_bounds = array<i64: 1, 128>}, {transform_indices = @transform_9, window_bounds = array<i64: 16, 128>}]} {
    %c0 = arith.constant 0 : index
    %c0_0 = arith.constant 0 : index
    %0 = vector.load %arg1[%c0, %c0_0] : memref<16x128xf32, #tpu.memory_space<vmem>>, vector<16x128xf32>
    %1 = arith.truncf %0 : vector<16x128xf32> to vector<16x128xbf16>
    %c0_1 = arith.constant 0 : index
    %c0_2 = arith.constant 0 : index
    %c0_3 = arith.constant 0 : index
    %2 = vector.load %arg2[%c0_1, %c0_2, %c0_3] : memref<2x128x128xbf16, #tpu.memory_space<vmem>>, vector<1x128x128xbf16>
    %3 = vector.shape_cast %2 : vector<1x128x128xbf16> to vector<128x128xbf16>
    %cst = arith.constant dense<0.000000e+00> : vector<16x128xf32>
    %4 = tpu.matmul %1, %3, %cst {dimension_numbers = #tpu.dot_dimension_numbers<[1], [0], [0], [1], [0, 0, 1, 1], [], []>} : vector<16x128xbf16>, vector<128x128xbf16>, vector<16x128xf32> -> vector<16x128xf32>
    %c0_4 = arith.constant 0 : index
    %c0_5 = arith.constant 0 : index
    %5 = vector.load %arg3[%c0_4, %c0_5] : memref<2x128xf32, #tpu.memory_space<vmem>>, vector<1x128xf32>
    %6 = vector.shape_cast %5 : vector<1x128xf32> to vector<128xf32>
    %7 = vector.shape_cast %6 : vector<128xf32> to vector<1x128xf32>
    %8 = vector.broadcast %7 : vector<1x128xf32> to vector<16x128xf32>
    %9 = arith.addf %4, %8 : vector<16x128xf32>
    %cst_6 = arith.constant 0.000000e+00 : f32
    %10 = vector.broadcast %cst_6 : f32 to vector<16x128xf32>
    %11 = arith.maximumf %9, %10 : vector<16x128xf32>
    %12 = arith.truncf %11 : vector<16x128xf32> to vector<16x128xbf16>
    %c0_7 = arith.constant 0 : index
    %c0_8 = arith.constant 0 : index
    %c0_9 = arith.constant 0 : index
    %13 = vector.load %arg4[%c0_7, %c0_8, %c0_9] : memref<2x128x128xbf16, #tpu.memory_space<vmem>>, vector<1x128x128xbf16>
    %14 = vector.shape_cast %13 : vector<1x128x128xbf16> to vector<128x128xbf16>
    %cst_10 = arith.constant dense<0.000000e+00> : vector<16x128xf32>
    %15 = tpu.matmul %12, %14, %cst_10 {dimension_numbers = #tpu.dot_dimension_numbers<[1], [0], [0], [1], [0, 0, 1, 1], [], []>} : vector<16x128xbf16>, vector<128x128xbf16>, vector<16x128xf32> -> vector<16x128xf32>
    %c0_11 = arith.constant 0 : index
    %c0_12 = arith.constant 0 : index
    %16 = vector.load %arg5[%c0_11, %c0_12] : memref<2x128xf32, #tpu.memory_space<vmem>>, vector<1x128xf32>
    %17 = vector.shape_cast %16 : vector<1x128xf32> to vector<128xf32>
    %18 = vector.shape_cast %17 : vector<128xf32> to vector<1x128xf32>
    %19 = vector.broadcast %18 : vector<1x128xf32> to vector<16x128xf32>
    %20 = arith.addf %15, %19 : vector<16x128xf32>
    %cst_13 = arith.constant 0.000000e+00 : f32
    %21 = vector.broadcast %cst_13 : f32 to vector<16x128xf32>
    %22 = arith.maximumf %20, %21 : vector<16x128xf32>
    %23 = arith.truncf %22 : vector<16x128xf32> to vector<16x128xbf16>
    %c0_14 = arith.constant 0 : index
    %c0_15 = arith.constant 0 : index
    %c0_16 = arith.constant 0 : index
    %24 = vector.load %arg6[%c0_14, %c0_15, %c0_16] : memref<2x128x128xbf16, #tpu.memory_space<vmem>>, vector<1x128x128xbf16>
    %25 = vector.shape_cast %24 : vector<1x128x128xbf16> to vector<128x128xbf16>
    %cst_17 = arith.constant dense<0.000000e+00> : vector<16x128xf32>
    %26 = tpu.matmul %23, %25, %cst_17 {dimension_numbers = #tpu.dot_dimension_numbers<[1], [0], [0], [1], [0, 0, 1, 1], [], []>} : vector<16x128xbf16>, vector<128x128xbf16>, vector<16x128xf32> -> vector<16x128xf32>
    %c0_18 = arith.constant 0 : index
    %c0_19 = arith.constant 0 : index
    %27 = vector.load %arg7[%c0_18, %c0_19] : memref<2x128xf32, #tpu.memory_space<vmem>>, vector<1x128xf32>
    %28 = vector.shape_cast %27 : vector<1x128xf32> to vector<128xf32>
    %29 = vector.shape_cast %28 : vector<128xf32> to vector<1x128xf32>
    %30 = vector.broadcast %29 : vector<1x128xf32> to vector<16x128xf32>
    %31 = arith.addf %26, %30 : vector<16x128xf32>
    %32 = arith.addf %31, %0 : vector<16x128xf32>
    %33 = arith.truncf %32 : vector<16x128xf32> to vector<16x128xbf16>
    %c1 = arith.constant 1 : index
    %c0_20 = arith.constant 0 : index
    %c0_21 = arith.constant 0 : index
    %34 = vector.load %arg2[%c1, %c0_20, %c0_21] : memref<2x128x128xbf16, #tpu.memory_space<vmem>>, vector<1x128x128xbf16>
    %35 = vector.shape_cast %34 : vector<1x128x128xbf16> to vector<128x128xbf16>
    %cst_22 = arith.constant dense<0.000000e+00> : vector<16x128xf32>
    %36 = tpu.matmul %33, %35, %cst_22 {dimension_numbers = #tpu.dot_dimension_numbers<[1], [0], [0], [1], [0, 0, 1, 1], [], []>} : vector<16x128xbf16>, vector<128x128xbf16>, vector<16x128xf32> -> vector<16x128xf32>
    %c1_23 = arith.constant 1 : index
    %c0_24 = arith.constant 0 : index
    %37 = vector.load %arg3[%c1_23, %c0_24] : memref<2x128xf32, #tpu.memory_space<vmem>>, vector<1x128xf32>
    %38 = vector.shape_cast %37 : vector<1x128xf32> to vector<128xf32>
    %39 = vector.shape_cast %38 : vector<128xf32> to vector<1x128xf32>
    %40 = vector.broadcast %39 : vector<1x128xf32> to vector<16x128xf32>
    %41 = arith.addf %36, %40 : vector<16x128xf32>
    %cst_25 = arith.constant 0.000000e+00 : f32
    %42 = vector.broadcast %cst_25 : f32 to vector<16x128xf32>
    %43 = arith.maximumf %41, %42 : vector<16x128xf32>
    %44 = arith.truncf %43 : vector<16x128xf32> to vector<16x128xbf16>
    %c1_26 = arith.constant 1 : index
    %c0_27 = arith.constant 0 : index
    %c0_28 = arith.constant 0 : index
    %45 = vector.load %arg4[%c1_26, %c0_27, %c0_28] : memref<2x128x128xbf16, #tpu.memory_space<vmem>>, vector<1x128x128xbf16>
    %46 = vector.shape_cast %45 : vector<1x128x128xbf16> to vector<128x128xbf16>
    %cst_29 = arith.constant dense<0.000000e+00> : vector<16x128xf32>
    %47 = tpu.matmul %44, %46, %cst_29 {dimension_numbers = #tpu.dot_dimension_numbers<[1], [0], [0], [1], [0, 0, 1, 1], [], []>} : vector<16x128xbf16>, vector<128x128xbf16>, vector<16x128xf32> -> vector<16x128xf32>
    %c1_30 = arith.constant 1 : index
    %c0_31 = arith.constant 0 : index
    %48 = vector.load %arg5[%c1_30, %c0_31] : memref<2x128xf32, #tpu.memory_space<vmem>>, vector<1x128xf32>
    %49 = vector.shape_cast %48 : vector<1x128xf32> to vector<128xf32>
    %50 = vector.shape_cast %49 : vector<128xf32> to vector<1x128xf32>
    %51 = vector.broadcast %50 : vector<1x128xf32> to vector<16x128xf32>
    %52 = arith.addf %47, %51 : vector<16x128xf32>
    %cst_32 = arith.constant 0.000000e+00 : f32
    %53 = vector.broadcast %cst_32 : f32 to vector<16x128xf32>
    %54 = arith.maximumf %52, %53 : vector<16x128xf32>
    %55 = arith.truncf %54 : vector<16x128xf32> to vector<16x128xbf16>
    %c1_33 = arith.constant 1 : index
    %c0_34 = arith.constant 0 : index
    %c0_35 = arith.constant 0 : index
    %56 = vector.load %arg6[%c1_33, %c0_34, %c0_35] : memref<2x128x128xbf16, #tpu.memory_space<vmem>>, vector<1x128x128xbf16>
    %57 = vector.shape_cast %56 : vector<1x128x128xbf16> to vector<128x128xbf16>
    %cst_36 = arith.constant dense<0.000000e+00> : vector<16x128xf32>
    %58 = tpu.matmul %55, %57, %cst_36 {dimension_numbers = #tpu.dot_dimension_numbers<[1], [0], [0], [1], [0, 0, 1, 1], [], []>} : vector<16x128xbf16>, vector<128x128xbf16>, vector<16x128xf32> -> vector<16x128xf32>
    %c1_37 = arith.constant 1 : index
    %c0_38 = arith.constant 0 : index
    %59 = vector.load %arg7[%c1_37, %c0_38] : memref<2x128xf32, #tpu.memory_space<vmem>>, vector<1x128xf32>
    %60 = vector.shape_cast %59 : vector<1x128xf32> to vector<128xf32>
    %61 = vector.shape_cast %60 : vector<128xf32> to vector<1x128xf32>
    %62 = vector.broadcast %61 : vector<1x128xf32> to vector<16x128xf32>
    %63 = arith.addf %58, %62 : vector<16x128xf32>
    %64 = arith.addf %63, %32 : vector<16x128xf32>
    %cst_39 = arith.constant dense<0.000000e+00> : vector<16xf32>
    %65 = vector.multi_reduction <add>, %64, %cst_39 [1] : vector<16x128xf32> to vector<16xf32>
    %66 = vector.shape_cast %65 : vector<16xf32> to vector<16x1xf32>
    %cst_40 = arith.constant 7.812500e-03 : f32
    %67 = vector.broadcast %cst_40 : f32 to vector<16x1xf32>
    %68 = arith.mulf %66, %67 : vector<16x1xf32>
    %69 = vector.broadcast %68 : vector<16x1xf32> to vector<16x128xf32>
    %70 = arith.subf %64, %69 : vector<16x128xf32>
    %71 = arith.mulf %70, %70 : vector<16x128xf32>
    %cst_41 = arith.constant dense<0.000000e+00> : vector<16xf32>
    %72 = vector.multi_reduction <add>, %71, %cst_41 [1] : vector<16x128xf32> to vector<16xf32>
    %73 = vector.shape_cast %72 : vector<16xf32> to vector<16x1xf32>
    %cst_42 = arith.constant 7.812500e-03 : f32
    %74 = vector.broadcast %cst_42 : f32 to vector<16x1xf32>
    %75 = arith.mulf %73, %74 : vector<16x1xf32>
    %cst_43 = arith.constant 9.99999974E-6 : f32
    %76 = vector.broadcast %cst_43 : f32 to vector<16x1xf32>
    %77 = arith.addf %75, %76 : vector<16x1xf32>
    %78 = math.rsqrt %77 : vector<16x1xf32>
    %79 = vector.broadcast %78 : vector<16x1xf32> to vector<16x128xf32>
    %80 = arith.mulf %70, %79 : vector<16x128xf32>
    %c0_44 = arith.constant 0 : index
    %c0_45 = arith.constant 0 : index
    %81 = vector.load %arg8[%c0_44, %c0_45] : memref<1x128xf32, #tpu.memory_space<vmem>>, vector<1x128xf32>
    %82 = vector.broadcast %81 : vector<1x128xf32> to vector<16x128xf32>
    %83 = arith.mulf %80, %82 : vector<16x128xf32>
    %c0_46 = arith.constant 0 : index
    %c0_47 = arith.constant 0 : index
    %84 = vector.load %arg9[%c0_46, %c0_47] : memref<1x128xf32, #tpu.memory_space<vmem>>, vector<1x128xf32>
    %85 = vector.broadcast %84 : vector<1x128xf32> to vector<16x128xf32>
    %86 = arith.addf %83, %85 : vector<16x128xf32>
    %c0_48 = arith.constant 0 : index
    %c0_49 = arith.constant 0 : index
    %87 = vector.load %arg10[%c0_48, %c0_49] : memref<16x128xf32, #tpu.memory_space<vmem>>, vector<16x128xf32>
    tpu.vector_store %arg10[%c0_48, %c0_49], %86 {strides = array<i32>} : memref<16x128xf32, #tpu.memory_space<vmem>>, vector<16x128xf32>,
    return
  }
  func.func @transform_0(%arg0: i32) -> (i32, i32) {
    %c0_i32 = arith.constant 0 : i32
    %c0_i32_0 = arith.constant 0 : i32
    return %arg0, %c0_i32 : i32, i32
  }
  func.func @transform_1(%arg0: i32) -> (i32, i32, i32) {
    %c0_i32 = arith.constant 0 : i32
    %c0_i32_0 = arith.constant 0 : i32
    %c0_i32_1 = arith.constant 0 : i32
    %c0_i32_2 = arith.constant 0 : i32
    return %c0_i32, %c0_i32_0, %c0_i32_1 : i32, i32, i32
  }
  func.func @transform_2(%arg0: i32) -> (i32, i32) {
    %c0_i32 = arith.constant 0 : i32
    %c0_i32_0 = arith.constant 0 : i32
    %c0_i32_1 = arith.constant 0 : i32
    return %c0_i32, %c0_i32_0 : i32, i32
  }
  func.func @transform_3(%arg0: i32) -> (i32, i32, i32) {
    %c0_i32 = arith.constant 0 : i32
    %c0_i32_0 = arith.constant 0 : i32
    %c0_i32_1 = arith.constant 0 : i32
    %c0_i32_2 = arith.constant 0 : i32
    return %c0_i32, %c0_i32_0, %c0_i32_1 : i32, i32, i32
  }
  func.func @transform_4(%arg0: i32) -> (i32, i32) {
    %c0_i32 = arith.constant 0 : i32
    %c0_i32_0 = arith.constant 0 : i32
    %c0_i32_1 = arith.constant 0 : i32
    return %c0_i32, %c0_i32_0 : i32, i32
  }
  func.func @transform_5(%arg0: i32) -> (i32, i32, i32) {
    %c0_i32 = arith.constant 0 : i32
    %c0_i32_0 = arith.constant 0 : i32
    %c0_i32_1 = arith.constant 0 : i32
    %c0_i32_2 = arith.constant 0 : i32
    return %c0_i32, %c0_i32_0, %c0_i32_1 : i32, i32, i32
  }
  func.func @transform_6(%arg0: i32) -> (i32, i32) {
    %c0_i32 = arith.constant 0 : i32
    %c0_i32_0 = arith.constant 0 : i32
    %c0_i32_1 = arith.constant 0 : i32
    return %c0_i32, %c0_i32_0 : i32, i32
  }
  func.func @transform_7(%arg0: i32) -> (i32, i32) {
    %c0_i32 = arith.constant 0 : i32
    %c0_i32_0 = arith.constant 0 : i32
    %c0_i32_1 = arith.constant 0 : i32
    return %c0_i32, %c0_i32_0 : i32, i32
  }
  func.func @transform_8(%arg0: i32) -> (i32, i32) {
    %c0_i32 = arith.constant 0 : i32
    %c0_i32_0 = arith.constant 0 : i32
    %c0_i32_1 = arith.constant 0 : i32
    return %c0_i32, %c0_i32_0 : i32, i32
  }
  func.func @transform_9(%arg0: i32) -> (i32, i32) {
    %c0_i32 = arith.constant 0 : i32
    %c0_i32_0 = arith.constant 0 : i32
    return %arg0, %c0_i32 : i32, i32
  }
}

</mosaic_0001>

<llo_original>
// kernel: tpu_custom_call.1
$region0: #{tpu_custom_call.1}
  #allocation0 [shape = 'u32[]', space=smem, size = 0x4, offset = 0x4, fixed_abs, tag = 'smem constant byte address 0x4 - core index']
  #allocation1 [shape = 'u32[144,128]{1,0:T(1,128)}', space=vmem, size = 0x12000, scoped, tag = 'internal scratch']
  %s0 = inlined_call_operand.hbm [shape: f32[16,128], index: 0, kind: input, shape index: {}]
  %s1 = inlined_call_operand.hbm [shape: bf16[2,128,128], index: 1, kind: input, shape index: {}]
  %s2 = inlined_call_operand.vmem [shape: f32[2,128], index: 2, kind: input, shape index: {}]
  %s3 = inlined_call_operand.hbm [shape: bf16[2,128,128], index: 3, kind: input, shape index: {}]
  %s4 = inlined_call_operand.vmem [shape: f32[2,128], index: 4, kind: input, shape index: {}]
  %s5 = inlined_call_operand.hbm [shape: bf16[2,128,128], index: 5, kind: input, shape index: {}]
  %s6 = inlined_call_operand.vmem [shape: f32[2,128], index: 6, kind: input, shape index: {}]
  %s7 = inlined_call_operand.vmem [shape: f32[1,128], index: 7, kind: input, shape index: {}]
  %s8 = inlined_call_operand.vmem [shape: f32[1,128], index: 8, kind: input, shape index: {}]
  %s9 = inlined_call_operand.hbm [shape: f32[16,128], index: 9, kind: output, shape index: {}]
  %s10 = sld [smem:[#allocation0]]
  $region62: #{tpu_custom_call.1} parent=0
    _
  %s12 = ssub.s32 1, %s10
  %s13 = scalar_select 0, %s12, %s10
  $region1: #{tpu_custom_call.1} parent=0
    #allocation2 [shape = 'u8[8192]{0}', space=vmem, size = 0x2000, scoped, tag = 'input window, operand 0, single buffered']
    #allocation3 [shape = 's32[1]{0}', space=sflag, size = 0x4, scoped, tag = 'scoped memory for tpu_custom_call.1']
    #allocation4 [shape = 's32[1]{0}', space=sflag, size = 0x4, scoped, tag = 'scoped memory for tpu_custom_call.1']
    #allocation5 [shape = 'u8[65536]{0}', space=vmem, size = 0x10000, scoped, tag = 'input window, operand 1, single buffered']
    #allocation6 [shape = 's32[1]{0}', space=sflag, size = 0x4, scoped, tag = 'scoped memory for tpu_custom_call.1']
    #allocation7 [shape = 'u8[65536]{0}', space=vmem, size = 0x10000, scoped, tag = 'input window, operand 3, single buffered']
    #allocation8 [shape = 'u8[65536]{0}', space=vmem, size = 0x10000, scoped, tag = 'input window, operand 5, single buffered']
    #allocation9 [shape = 's32[1]{0}', space=sflag, size = 0x4, scoped, tag = 'scoped memory for tpu_custom_call.1']
    #allocation10 [shape = 'u8[8192]{0}', space=vmem, size = 0x2000, scoped, tag = 'output window, operand 0, single buffered']
    %14 = vsyncpa [#allocation3], 0
    %15 = vsyncpa [#allocation6], 0
    %16 = vsyncpa [#allocation9], 0
    %17 = vsyncpa [#allocation4], 0
    // Predicated region
    $region2: #{tpu_custom_call.1} parent=1 // pred_check
      _
    $region3: #{tpu_custom_call.1} parent=1 // pred_check_branch
      %19 = sbr.rel (0) target = $region5
    $region4: #{tpu_custom_call.1} parent=1 // pred_region
      %s21 = ssub.s32 256, 256
      %22 = vsyncadd [#allocation3], %s21
      %s23 = sshll.u32 [#allocation2], 4
      %s24 = int_to_ptr.vmem [resolvable:$true] %s23
      %29 = dma.hbm_to_vmem [thread:$0]  %s0, 256, %s24, [#allocation3], 128, 128, 8
    $region5: #{tpu_custom_call.1} parent=1 // pred_fallthru
      _
    // Predicated region
    $region6: #{tpu_custom_call.1} parent=1 // pred_check
      _
    $region7: #{tpu_custom_call.1} parent=1 // pred_check_branch
      %31 = sbr.rel (0) target = $region9
    $region8: #{tpu_custom_call.1} parent=1 // pred_region
      %s33 = ssub.s32 2048, 2048
      %34 = vsyncadd [#allocation6], %s33
      %s35 = sshll.u32 [#allocation5], 4
      %s36 = int_to_ptr.vmem [resolvable:$true] %s35
      %41 = dma.hbm_to_vmem [thread:$0]  %s1, 2048, %s36, [#allocation6], 64, 64, 4
    $region9: #{tpu_custom_call.1} parent=1 // pred_fallthru
      _
    // Predicated region
    $region10: #{tpu_custom_call.1} parent=1 // pred_check
      _
    $region11: #{tpu_custom_call.1} parent=1 // pred_check_branch
      %43 = sbr.rel (0) target = $region13
    $region12: #{tpu_custom_call.1} parent=1 // pred_region
      _
    $region13: #{tpu_custom_call.1} parent=1 // pred_fallthru
      _
    // Predicated region
    $region14: #{tpu_custom_call.1} parent=1 // pred_check
      _
    $region15: #{tpu_custom_call.1} parent=1 // pred_check_branch
      %45 = sbr.rel (0) target = $region17
    $region16: #{tpu_custom_call.1} parent=1 // pred_region
      %s47 = ssub.s32 2048, 2048
      %48 = vsyncadd [#allocation6], %s47
      %s49 = sshll.u32 [#allocation7], 4
      %s50 = int_to_ptr.vmem [resolvable:$true] %s49
      %55 = dma.hbm_to_vmem [thread:$0]  %s3, 2048, %s50, [#allocation6], 64, 64, 4
    $region17: #{tpu_custom_call.1} parent=1 // pred_fallthru
      _
    // Predicated region
    $region18: #{tpu_custom_call.1} parent=1 // pred_check
      _
    $region19: #{tpu_custom_call.1} parent=1 // pred_check_branch
      %57 = sbr.rel (0) target = $region21
    $region20: #{tpu_custom_call.1} parent=1 // pred_region
      _
    $region21: #{tpu_custom_call.1} parent=1 // pred_fallthru
      _
    // Predicated region
    $region22: #{tpu_custom_call.1} parent=1 // pred_check
      _
    $region23: #{tpu_custom_call.1} parent=1 // pred_check_branch
      %59 = sbr.rel (0) target = $region25
    $region24: #{tpu_custom_call.1} parent=1 // pred_region
      %s61 = ssub.s32 2048, 2048
      %62 = vsyncadd [#allocation9], %s61
      %s63 = sshll.u32 [#allocation8], 4
      %s64 = int_to_ptr.vmem [resolvable:$true] %s63
      %69 = dma.hbm_to_vmem [thread:$0]  %s5, 2048, %s64, [#allocation9], 64, 64, 4
    $region25: #{tpu_custom_call.1} parent=1 // pred_fallthru
      _
    // Predicated region
    $region26: #{tpu_custom_call.1} parent=1 // pred_check
      _
    $region27: #{tpu_custom_call.1} parent=1 // pred_check_branch
      %71 = sbr.rel (0) target = $region29
    $region28: #{tpu_custom_call.1} parent=1 // pred_region
      _
    $region29: #{tpu_custom_call.1} parent=1 // pred_fallthru
      _
    // Predicated region
    $region30: #{tpu_custom_call.1} parent=1 // pred_check
      _
    $region31: #{tpu_custom_call.1} parent=1 // pred_check_branch
      %73 = sbr.rel (0) target = $region33
    $region32: #{tpu_custom_call.1} parent=1 // pred_region
      _
    $region33: #{tpu_custom_call.1} parent=1 // pred_fallthru
      _
    // Predicated region
    $region34: #{tpu_custom_call.1} parent=1 // pred_check
      _
    $region35: #{tpu_custom_call.1} parent=1 // pred_check_branch
      %75 = sbr.rel (0) target = $region37
    $region36: #{tpu_custom_call.1} parent=1 // pred_region
      _
    $region37: #{tpu_custom_call.1} parent=1 // pred_fallthru
      _
    // Predicated region
    $region38: #{tpu_custom_call.1} parent=1 // pred_check
      _
    $region39: #{tpu_custom_call.1} parent=1 // pred_check_branch
      %77 = sbr.rel (0) target = $region41
    $region40: #{tpu_custom_call.1} parent=1 // pred_region
      %78 = dma.done [#allocation3], 256
    $region41: #{tpu_custom_call.1} parent=1 // pred_fallthru
      _
    // Predicated region
    $region42: #{tpu_custom_call.1} parent=1 // pred_check
      _
    $region43: #{tpu_custom_call.1} parent=1 // pred_check_branch
      %80 = sbr.rel (0) target = $region45
    $region44: #{tpu_custom_call.1} parent=1 // pred_region
      %81 = dma.done [#allocation6], 2048
    $region45: #{tpu_custom_call.1} parent=1 // pred_fallthru
      _
    // Predicated region
    $region46: #{tpu_custom_call.1} parent=1 // pred_check
      _
    $region47: #{tpu_custom_call.1} parent=1 // pred_check_branch
      %83 = sbr.rel (0) target = $region49
    $region48: #{tpu_custom_call.1} parent=1 // pred_region
      %84 = dma.done [#allocation6], 2048
    $region49: #{tpu_custom_call.1} parent=1 // pred_fallthru
      _
    // Predicated region
    $region50: #{tpu_custom_call.1} parent=1 // pred_check
      _
    $region51: #{tpu_custom_call.1} parent=1 // pred_check_branch
      %86 = sbr.rel (0) target = $region53
    $region52: #{tpu_custom_call.1} parent=1 // pred_region
      %87 = dma.done [#allocation9], 2048
    $region53: #{tpu_custom_call.1} parent=1 // pred_fallthru
      _
    %v89 = vld [vmem:[#allocation2] sm:$0xff]
    %v90 = vld [vmem:[#allocation2 + $0x8] sm:$0xff]
    %v91 = vpack.c.bf16 %v90, %v89
    %v92 = vld [vmem:[#allocation5] sm:$0xf]
    %v93 = vld [vmem:[#allocation5 + $0x4] sm:$0xf]
    %v94 = vld [vmem:[#allocation5 + $0x8] sm:$0xf]
    %v95 = vld [vmem:[#allocation5 + $0xc] sm:$0xf]
    %v96 = vld [vmem:[#allocation5 + $0x10] sm:$0xf]
    %v97 = vld [vmem:[#allocation5 + $0x14] sm:$0xf]
    %v98 = vld [vmem:[#allocation5 + $0x18] sm:$0xf]
    %v99 = vld [vmem:[#allocation5 + $0x1c] sm:$0xf]
    %v100 = vld [vmem:[#allocation5 + $0x20] sm:$0xf]
    %v101 = vld [vmem:[#allocation5 + $0x24] sm:$0xf]
    %v102 = vld [vmem:[#allocation5 + $0x28] sm:$0xf]
    %v103 = vld [vmem:[#allocation5 + $0x2c] sm:$0xf]
    %v104 = vld [vmem:[#allocation5 + $0x30] sm:$0xf]
    %v105 = vld [vmem:[#allocation5 + $0x34] sm:$0xf]
    %v106 = vld [vmem:[#allocation5 + $0x38] sm:$0xf]
    %v107 = vld [vmem:[#allocation5 + $0x3c] sm:$0xf]
    %v108 = vld [vmem:[%s2] sm:$0x1]
    %v109 = vlaneseq
    %v110 = vshrl.u32 %v109, 7
    %v111 = vsub.s32 0, %v110
    %v112 = vrot.slane %v108, %v111
    %v129 = vunpack.c.l.b16 %v92
    %v130 = vunpack.c.l.b16 %v93
    %v131 = vunpack.c.l.b16 %v94
    %v132 = vunpack.c.l.b16 %v95
    %v133 = vunpack.c.l.b16 %v96
    %v134 = vunpack.c.l.b16 %v97
    %v135 = vunpack.c.l.b16 %v98
    %v136 = vunpack.c.l.b16 %v99
    %v137 = vunpack.c.l.b16 %v100
    %v138 = vunpack.c.l.b16 %v101
    %v139 = vunpack.c.l.b16 %v102
    %v140 = vunpack.c.l.b16 %v103
    %v141 = vunpack.c.l.b16 %v104
    %v142 = vunpack.c.l.b16 %v105
    %v143 = vunpack.c.l.b16 %v106
    %v144 = vunpack.c.l.b16 %v107
    %v145 = vpack.c.b16 %v130, %v129
    %v146 = vpack.c.b16 %v132, %v131
    %v147 = vpack.c.b16 %v134, %v133
    %v148 = vpack.c.b16 %v136, %v135
    %v149 = vpack.c.b16 %v138, %v137
    %v150 = vpack.c.b16 %v140, %v139
    %v151 = vpack.c.b16 %v142, %v141
    %v152 = vpack.c.b16 %v144, %v143
    %161 = vmatprep.subr.bf16.mxu0 0
    %162 = vmatpush1.bf16.msra.mxu0 %v152
    %163 = vmatprep.subr.bf16.mxu0 0
    %164 = vmatpush1.bf16.msra.mxu0 %v151
    %165 = vmatprep.subr.bf16.mxu0 0
    %166 = vmatpush1.bf16.msra.mxu0 %v150
    %167 = vmatprep.subr.bf16.mxu0 0
    %168 = vmatpush1.bf16.msra.mxu0 %v149
    %169 = vmatprep.subr.bf16.mxu0 0
    %170 = vmatpush1.bf16.msra.mxu0 %v148
    %171 = vmatprep.subr.bf16.mxu0 0
    %172 = vmatpush1.bf16.msra.mxu0 %v147
    %173 = vmatprep.subr.bf16.mxu0 0
    %174 = vmatpush1.bf16.msra.mxu0 %v146
    %175 = vmatprep.subr.bf16.mxu0 0
    %176 = vmatpush1.bf16.msra.mxu0 %v145
    %177 = vmatprep.subr.bf16.mxu0 0
    %178 = vmatpush2.bf16.msra.mxu0 0
    %179 = vmatprep.subr.bf16.mxu0 0
    %180 = vmatpush2.bf16.msra.mxu0 0
    %181 = vmatprep.subr.bf16.mxu0 0
    %182 = vmatpush2.bf16.msra.mxu0 0
    %183 = vmatprep.subr.bf16.mxu0 0
    %184 = vmatpush2.bf16.msra.mxu0 0
    %185 = vmatprep.subr.bf16.mxu0 0
    %186 = vmatpush2.bf16.msra.mxu0 0
    %187 = vmatprep.subr.bf16.mxu0 0
    %188 = vmatpush2.bf16.msra.mxu0 0
    %189 = vmatprep.subr.bf16.mxu0 0
    %190 = vmatpush2.bf16.msra.mxu0 0
    %191 = vmatprep.subr.bf16.mxu0 0
    %192 = vmatpush2.bf16.msra.mxu0 0
    %193 = vmatprep.mubr.bf16.mxu0 0
    %194 = vmatmul.mubr.bf16.gmra.mxu0 %v91
    %v195 = vpop.f32.mrf.mxu0
    %v196 = vadd.f32 %v112, %v195
    %v197 = vpop.f32.mrf.mxu0
    %v198 = vpop.f32.mrf.mxu0
    %v199 = vadd.f32 %v112, %v198
    %v200 = vpop.f32.mrf.mxu0
    %201 = vdwg.mxu0
    %v202 = vmax.f32 %v196, 0.0
    %v203 = vmax.f32 %v199, 0.0
    %v204 = vpack.c.bf16 %v203, %v202
    %v205 = vld [vmem:[#allocation7] sm:$0xf]
    %v206 = vld [vmem:[#allocation7 + $0x4] sm:$0xf]
    %v207 = vld [vmem:[#allocation7 + $0x8] sm:$0xf]
    %v208 = vld [vmem:[#allocation7 + $0xc] sm:$0xf]
    %v209 = vld [vmem:[#allocation7 + $0x10] sm:$0xf]
    %v210 = vld [vmem:[#allocation7 + $0x14] sm:$0xf]
    %v211 = vld [vmem:[#allocation7 + $0x18] sm:$0xf]
    %v212 = vld [vmem:[#allocation7 + $0x1c] sm:$0xf]
    %v213 = vld [vmem:[#allocation7 + $0x20] sm:$0xf]
    %v214 = vld [vmem:[#allocation7 + $0x24] sm:$0xf]
    %v215 = vld [vmem:[#allocation7 + $0x28] sm:$0xf]
    %v216 = vld [vmem:[#allocation7 + $0x2c] sm:$0xf]
    %v217 = vld [vmem:[#allocation7 + $0x30] sm:$0xf]
    %v218 = vld [vmem:[#allocation7 + $0x34] sm:$0xf]
    %v219 = vld [vmem:[#allocation7 + $0x38] sm:$0xf]
    %v220 = vld [vmem:[#allocation7 + $0x3c] sm:$0xf]
    %v221 = vld [vmem:[%s4] sm:$0x1]
    %v222 = vlaneseq
    %v223 = vshrl.u32 %v222, 7
    %v224 = vsub.s32 0, %v223
    %v225 = vrot.slane %v221, %v224
    %v242 = vunpack.c.l.b16 %v205
    %v243 = vunpack.c.l.b16 %v206
    %v244 = vunpack.c.l.b16 %v207
    %v245 = vunpack.c.l.b16 %v208
    %v246 = vunpack.c.l.b16 %v209
    %v247 = vunpack.c.l.b16 %v210
    %v248 = vunpack.c.l.b16 %v211
    %v249 = vunpack.c.l.b16 %v212
    %v250 = vunpack.c.l.b16 %v213
    %v251 = vunpack.c.l.b16 %v214
    %v252 = vunpack.c.l.b16 %v215
    %v253 = vunpack.c.l.b16 %v216
    %v254 = vunpack.c.l.b16 %v217
    %v255 = vunpack.c.l.b16 %v218
    %v256 = vunpack.c.l.b16 %v219
    %v257 = vunpack.c.l.b16 %v220
    %v258 = vpack.c.b16 %v243, %v242
    %v259 = vpack.c.b16 %v245, %v244
    %v260 = vpack.c.b16 %v247, %v246
    %v261 = vpack.c.b16 %v249, %v248
    %v262 = vpack.c.b16 %v251, %v250
    %v263 = vpack.c.b16 %v253, %v252
    %v264 = vpack.c.b16 %v255, %v254
    %v265 = vpack.c.b16 %v257, %v256
    %274 = vmatprep.subr.bf16.mxu0 0
    %275 = vmatpush1.bf16.msra.mxu0 %v265
    %276 = vmatprep.subr.bf16.mxu0 0
    %277 = vmatpush1.bf16.msra.mxu0 %v264
    %278 = vmatprep.subr.bf16.mxu0 0
    %279 = vmatpush1.bf16.msra.mxu0 %v263
    %280 = vmatprep.subr.bf16.mxu0 0
    %281 = vmatpush1.bf16.msra.mxu0 %v262
    %282 = vmatprep.subr.bf16.mxu0 0
    %283 = vmatpush1.bf16.msra.mxu0 %v261
    %284 = vmatprep.subr.bf16.mxu0 0
    %285 = vmatpush1.bf16.msra.mxu0 %v260
    %286 = vmatprep.subr.bf16.mxu0 0
    %287 = vmatpush1.bf16.msra.mxu0 %v259
    %288 = vmatprep.subr.bf16.mxu0 0
    %289 = vmatpush1.bf16.msra.mxu0 %v258
    %290 = vmatprep.subr.bf16.mxu0 0
    %291 = vmatpush2.bf16.msra.mxu0 0
    %292 = vmatprep.subr.bf16.mxu0 0
    %293 = vmatpush2.bf16.msra.mxu0 0
    %294 = vmatprep.subr.bf16.mxu0 0
    %295 = vmatpush2.bf16.msra.mxu0 0
    %296 = vmatprep.subr.bf16.mxu0 0
    %297 = vmatpush2.bf16.msra.mxu0 0
    %298 = vmatprep.subr.bf16.mxu0 0
    %299 = vmatpush2.bf16.msra.mxu0 0
    %300 = vmatprep.subr.bf16.mxu0 0
    %301 = vmatpush2.bf16.msra.mxu0 0
    %302 = vmatprep.subr.bf16.mxu0 0
    %303 = vmatpush2.bf16.msra.mxu0 0
    %304 = vmatprep.subr.bf16.mxu0 0
    %305 = vmatpush2.bf16.msra.mxu0 0
    %306 = vmatprep.mubr.bf16.mxu0 0
    %307 = vmatmul.mubr.bf16.gmra.mxu0 %v204
    %v308 = vpop.f32.mrf.mxu0
    %v309 = vadd.f32 %v225, %v308
    %v310 = vpop.f32.mrf.mxu0
    %v311 = vpop.f32.mrf.mxu0
    %v312 = vadd.f32 %v225, %v311
    %v313 = vpop.f32.mrf.mxu0
    %314 = vdwg.mxu0
    %v315 = vmax.f32 %v309, 0.0
    %v316 = vmax.f32 %v312, 0.0
    %v317 = vpack.c.bf16 %v316, %v315
    %v318 = vld [vmem:[#allocation8] sm:$0xf]
    %v319 = vld [vmem:[#allocation8 + $0x4] sm:$0xf]
    %v320 = vld [vmem:[#allocation8 + $0x8] sm:$0xf]
    %v321 = vld [vmem:[#allocation8 + $0xc] sm:$0xf]
    %v322 = vld [vmem:[#allocation8 + $0x10] sm:$0xf]
    %v323 = vld [vmem:[#allocation8 + $0x14] sm:$0xf]
    %v324 = vld [vmem:[#allocation8 + $0x18] sm:$0xf]
    %v325 = vld [vmem:[#allocation8 + $0x1c] sm:$0xf]
    %v326 = vld [vmem:[#allocation8 + $0x20] sm:$0xf]
    %v327 = vld [vmem:[#allocation8 + $0x24] sm:$0xf]
    %v328 = vld [vmem:[#allocation8 + $0x28] sm:$0xf]
    %v329 = vld [vmem:[#allocation8 + $0x2c] sm:$0xf]
    %v330 = vld [vmem:[#allocation8 + $0x30] sm:$0xf]
    %v331 = vld [vmem:[#allocation8 + $0x34] sm:$0xf]
    %v332 = vld [vmem:[#allocation8 + $0x38] sm:$0xf]
    %v333 = vld [vmem:[#allocation8 + $0x3c] sm:$0xf]
    %v334 = vld [vmem:[%s6] sm:$0x1]
    %v335 = vlaneseq
    %v336 = vshrl.u32 %v335, 7
    %v337 = vsub.s32 0, %v336
    %v338 = vrot.slane %v334, %v337
    %v355 = vunpack.c.l.b16 %v318
    %v356 = vunpack.c.l.b16 %v319
    %v357 = vunpack.c.l.b16 %v320
    %v358 = vunpack.c.l.b16 %v321
    %v359 = vunpack.c.l.b16 %v322
    %v360 = vunpack.c.l.b16 %v323
    %v361 = vunpack.c.l.b16 %v324
    %v362 = vunpack.c.l.b16 %v325
    %v363 = vunpack.c.l.b16 %v326
    %v364 = vunpack.c.l.b16 %v327
    %v365 = vunpack.c.l.b16 %v328
    %v366 = vunpack.c.l.b16 %v329
    %v367 = vunpack.c.l.b16 %v330
    %v368 = vunpack.c.l.b16 %v331
    %v369 = vunpack.c.l.b16 %v332
    %v370 = vunpack.c.l.b16 %v333
    %v371 = vpack.c.b16 %v356, %v355
    %v372 = vpack.c.b16 %v358, %v357
    %v373 = vpack.c.b16 %v360, %v359
    %v374 = vpack.c.b16 %v362, %v361
    %v375 = vpack.c.b16 %v364, %v363
    %v376 = vpack.c.b16 %v366, %v365
    %v377 = vpack.c.b16 %v368, %v367
    %v378 = vpack.c.b16 %v370, %v369
    %387 = vmatprep.subr.bf16.mxu0 0
    %388 = vmatpush1.bf16.msra.mxu0 %v378
    %389 = vmatprep.subr.bf16.mxu0 0
    %390 = vmatpush1.bf16.msra.mxu0 %v377
    %391 = vmatprep.subr.bf16.mxu0 0
    %392 = vmatpush1.bf16.msra.mxu0 %v376
    %393 = vmatprep.subr.bf16.mxu0 0
    %394 = vmatpush1.bf16.msra.mxu0 %v375
    %395 = vmatprep.subr.bf16.mxu0 0
    %396 = vmatpush1.bf16.msra.mxu0 %v374
    %397 = vmatprep.subr.bf16.mxu0 0
    %398 = vmatpush1.bf16.msra.mxu0 %v373
    %399 = vmatprep.subr.bf16.mxu0 0
    %400 = vmatpush1.bf16.msra.mxu0 %v372
    %401 = vmatprep.subr.bf16.mxu0 0
    %402 = vmatpush1.bf16.msra.mxu0 %v371
    %403 = vmatprep.subr.bf16.mxu0 0
    %404 = vmatpush2.bf16.msra.mxu0 0
    %405 = vmatprep.subr.bf16.mxu0 0
    %406 = vmatpush2.bf16.msra.mxu0 0
    %407 = vmatprep.subr.bf16.mxu0 0
    %408 = vmatpush2.bf16.msra.mxu0 0
    %409 = vmatprep.subr.bf16.mxu0 0
    %410 = vmatpush2.bf16.msra.mxu0 0
    %411 = vmatprep.subr.bf16.mxu0 0
    %412 = vmatpush2.bf16.msra.mxu0 0
    %413 = vmatprep.subr.bf16.mxu0 0
    %414 = vmatpush2.bf16.msra.mxu0 0
    %415 = vmatprep.subr.bf16.mxu0 0
    %416 = vmatpush2.bf16.msra.mxu0 0
    %417 = vmatprep.subr.bf16.mxu0 0
    %418 = vmatpush2.bf16.msra.mxu0 0
    %419 = vmatprep.mubr.bf16.mxu0 0
    %420 = vmatmul.mubr.bf16.gmra.mxu0 %v317
    %v421 = vpop.f32.mrf.mxu0
    %v422 = vadd.f32 %v338, %v421
    %v423 = vpop.f32.mrf.mxu0
    %v424 = vpop.f32.mrf.mxu0
    %v425 = vadd.f32 %v338, %v424
    %v426 = vpop.f32.mrf.mxu0
    %427 = vdwg.mxu0
    %v428 = vadd.f32 %v422, %v89
    %v429 = vadd.f32 %v425, %v90
    %v430 = vpack.c.bf16 %v429, %v428
    %s431 = scalar_lea.vmem [#allocation5], 64
    %v432 = vld [vmem:[%s431] sm:$0xf]
    %v433 = vld [vmem:[%s431 + $0x4] sm:$0xf]
    %v434 = vld [vmem:[%s431 + $0x8] sm:$0xf]
    %v435 = vld [vmem:[%s431 + $0xc] sm:$0xf]
    %v436 = vld [vmem:[%s431 + $0x10] sm:$0xf]
    %v437 = vld [vmem:[%s431 + $0x14] sm:$0xf]
    %v438 = vld [vmem:[%s431 + $0x18] sm:$0xf]
    %v439 = vld [vmem:[%s431 + $0x1c] sm:$0xf]
    %v440 = vld [vmem:[%s431 + $0x20] sm:$0xf]
    %v441 = vld [vmem:[%s431 + $0x24] sm:$0xf]
    %v442 = vld [vmem:[%s431 + $0x28] sm:$0xf]
    %v443 = vld [vmem:[%s431 + $0x2c] sm:$0xf]
    %v444 = vld [vmem:[%s431 + $0x30] sm:$0xf]
    %v445 = vld [vmem:[%s431 + $0x34] sm:$0xf]
    %v446 = vld [vmem:[%s431 + $0x38] sm:$0xf]
    %v447 = vld [vmem:[%s431 + $0x3c] sm:$0xf]
    %v448 = vld [vmem:[%s2 + $0x1] sm:$0x1]
    %v449 = vlaneseq
    %v450 = vshrl.u32 %v449, 7
    %v451 = vsub.s32 0, %v450
    %v452 = vrot.slane %v448, %v451
    %v469 = vunpack.c.l.b16 %v432
    %v470 = vunpack.c.l.b16 %v433
    %v471 = vunpack.c.l.b16 %v434
    %v472 = vunpack.c.l.b16 %v435
    %v473 = vunpack.c.l.b16 %v436
    %v474 = vunpack.c.l.b16 %v437
    %v475 = vunpack.c.l.b16 %v438
    %v476 = vunpack.c.l.b16 %v439
    %v477 = vunpack.c.l.b16 %v440
    %v478 = vunpack.c.l.b16 %v441
    %v479 = vunpack.c.l.b16 %v442
    %v480 = vunpack.c.l.b16 %v443
    %v481 = vunpack.c.l.b16 %v444
    %v482 = vunpack.c.l.b16 %v445
    %v483 = vunpack.c.l.b16 %v446
    %v484 = vunpack.c.l.b16 %v447
    %v485 = vpack.c.b16 %v470, %v469
    %v486 = vpack.c.b16 %v472, %v471
    %v487 = vpack.c.b16 %v474, %v473
    %v488 = vpack.c.b16 %v476, %v475
    %v489 = vpack.c.b16 %v478, %v477
    %v490 = vpack.c.b16 %v480, %v479
    %v491 = vpack.c.b16 %v482, %v481
    %v492 = vpack.c.b16 %v484, %v483
    %501 = vmatprep.subr.bf16.mxu0 0
    %502 = vmatpush1.bf16.msra.mxu0 %v492
    %503 = vmatprep.subr.bf16.mxu0 0
    %504 = vmatpush1.bf16.msra.mxu0 %v491
    %505 = vmatprep.subr.bf16.mxu0 0
    %506 = vmatpush1.bf16.msra.mxu0 %v490
    %507 = vmatprep.subr.bf16.mxu0 0
    %508 = vmatpush1.bf16.msra.mxu0 %v489
    %509 = vmatprep.subr.bf16.mxu0 0
    %510 = vmatpush1.bf16.msra.mxu0 %v488
    %511 = vmatprep.subr.bf16.mxu0 0
    %512 = vmatpush1.bf16.msra.mxu0 %v487
    %513 = vmatprep.subr.bf16.mxu0 0
    %514 = vmatpush1.bf16.msra.mxu0 %v486
    %515 = vmatprep.subr.bf16.mxu0 0
    %516 = vmatpush1.bf16.msra.mxu0 %v485
    %517 = vmatprep.subr.bf16.mxu0 0
    %518 = vmatpush2.bf16.msra.mxu0 0
    %519 = vmatprep.subr.bf16.mxu0 0
    %520 = vmatpush2.bf16.msra.mxu0 0
    %521 = vmatprep.subr.bf16.mxu0 0
    %522 = vmatpush2.bf16.msra.mxu0 0
    %523 = vmatprep.subr.bf16.mxu0 0
    %524 = vmatpush2.bf16.msra.mxu0 0
    %525 = vmatprep.subr.bf16.mxu0 0
    %526 = vmatpush2.bf16.msra.mxu0 0
    %527 = vmatprep.subr.bf16.mxu0 0
    %528 = vmatpush2.bf16.msra.mxu0 0
    %529 = vmatprep.subr.bf16.mxu0 0
    %530 = vmatpush2.bf16.msra.mxu0 0
    %531 = vmatprep.subr.bf16.mxu0 0
    %532 = vmatpush2.bf16.msra.mxu0 0
    %533 = vmatprep.mubr.bf16.mxu0 0
    %534 = vmatmul.mubr.bf16.gmra.mxu0 %v430
    %v535 = vpop.f32.mrf.mxu0
    %v536 = vadd.f32 %v452, %v535
    %v537 = vpop.f32.mrf.mxu0
    %v538 = vpop.f32.mrf.mxu0
    %v539 = vadd.f32 %v452, %v538
    %v540 = vpop.f32.mrf.mxu0
    %541 = vdwg.mxu0
    %v542 = vmax.f32 %v536, 0.0
    %v543 = vmax.f32 %v539, 0.0
    %v544 = vpack.c.bf16 %v543, %v542
    %s545 = scalar_lea.vmem [#allocation7], 64
    %v546 = vld [vmem:[%s545] sm:$0xf]
    %v547 = vld [vmem:[%s545 + $0x4] sm:$0xf]
    %v548 = vld [vmem:[%s545 + $0x8] sm:$0xf]
    %v549 = vld [vmem:[%s545 + $0xc] sm:$0xf]
    %v550 = vld [vmem:[%s545 + $0x10] sm:$0xf]
    %v551 = vld [vmem:[%s545 + $0x14] sm:$0xf]
    %v552 = vld [vmem:[%s545 + $0x18] sm:$0xf]
    %v553 = vld [vmem:[%s545 + $0x1c] sm:$0xf]
    %v554 = vld [vmem:[%s545 + $0x20] sm:$0xf]
    %v555 = vld [vmem:[%s545 + $0x24] sm:$0xf]
    %v556 = vld [vmem:[%s545 + $0x28] sm:$0xf]
    %v557 = vld [vmem:[%s545 + $0x2c] sm:$0xf]
    %v558 = vld [vmem:[%s545 + $0x30] sm:$0xf]
    %v559 = vld [vmem:[%s545 + $0x34] sm:$0xf]
    %v560 = vld [vmem:[%s545 + $0x38] sm:$0xf]
    %v561 = vld [vmem:[%s545 + $0x3c] sm:$0xf]
    %v562 = vld [vmem:[%s4 + $0x1] sm:$0x1]
    %v563 = vlaneseq
    %v564 = vshrl.u32 %v563, 7
    %v565 = vsub.s32 0, %v564
    %v566 = vrot.slane %v562, %v565
    %v583 = vunpack.c.l.b16 %v546
    %v584 = vunpack.c.l.b16 %v547
    %v585 = vunpack.c.l.b16 %v548
    %v586 = vunpack.c.l.b16 %v549
    %v587 = vunpack.c.l.b16 %v550
    %v588 = vunpack.c.l.b16 %v551
    %v589 = vunpack.c.l.b16 %v552
    %v590 = vunpack.c.l.b16 %v553
    %v591 = vunpack.c.l.b16 %v554
    %v592 = vunpack.c.l.b16 %v555
    %v593 = vunpack.c.l.b16 %v556
    %v594 = vunpack.c.l.b16 %v557
    %v595 = vunpack.c.l.b16 %v558
    %v596 = vunpack.c.l.b16 %v559
    %v597 = vunpack.c.l.b16 %v560
    %v598 = vunpack.c.l.b16 %v561
    %v599 = vpack.c.b16 %v584, %v583
    %v600 = vpack.c.b16 %v586, %v585
    %v601 = vpack.c.b16 %v588, %v587
    %v602 = vpack.c.b16 %v590, %v589
    %v603 = vpack.c.b16 %v592, %v591
    %v604 = vpack.c.b16 %v594, %v593
    %v605 = vpack.c.b16 %v596, %v595
    %v606 = vpack.c.b16 %v598, %v597
    %615 = vmatprep.subr.bf16.mxu0 0
    %616 = vmatpush1.bf16.msra.mxu0 %v606
    %617 = vmatprep.subr.bf16.mxu0 0
    %618 = vmatpush1.bf16.msra.mxu0 %v605
    %619 = vmatprep.subr.bf16.mxu0 0
    %620 = vmatpush1.bf16.msra.mxu0 %v604
    %621 = vmatprep.subr.bf16.mxu0 0
    %622 = vmatpush1.bf16.msra.mxu0 %v603
    %623 = vmatprep.subr.bf16.mxu0 0
    %624 = vmatpush1.bf16.msra.mxu0 %v602
    %625 = vmatprep.subr.bf16.mxu0 0
    %626 = vmatpush1.bf16.msra.mxu0 %v601
    %627 = vmatprep.subr.bf16.mxu0 0
    %628 = vmatpush1.bf16.msra.mxu0 %v600
    %629 = vmatprep.subr.bf16.mxu0 0
    %630 = vmatpush1.bf16.msra.mxu0 %v599
    %631 = vmatprep.subr.bf16.mxu0 0
    %632 = vmatpush2.bf16.msra.mxu0 0
    %633 = vmatprep.subr.bf16.mxu0 0
    %634 = vmatpush2.bf16.msra.mxu0 0
    %635 = vmatprep.subr.bf16.mxu0 0
    %636 = vmatpush2.bf16.msra.mxu0 0
    %637 = vmatprep.subr.bf16.mxu0 0
    %638 = vmatpush2.bf16.msra.mxu0 0
    %639 = vmatprep.subr.bf16.mxu0 0
    %640 = vmatpush2.bf16.msra.mxu0 0
    %641 = vmatprep.subr.bf16.mxu0 0
    %642 = vmatpush2.bf16.msra.mxu0 0
    %643 = vmatprep.subr.bf16.mxu0 0
    %644 = vmatpush2.bf16.msra.mxu0 0
    %645 = vmatprep.subr.bf16.mxu0 0
    %646 = vmatpush2.bf16.msra.mxu0 0
    %647 = vmatprep.mubr.bf16.mxu0 0
    %648 = vmatmul.mubr.bf16.gmra.mxu0 %v544
    %v649 = vpop.f32.mrf.mxu0
    %v650 = vadd.f32 %v566, %v649
    %v651 = vpop.f32.mrf.mxu0
    %v652 = vpop.f32.mrf.mxu0
    %v653 = vadd.f32 %v566, %v652
    %v654 = vpop.f32.mrf.mxu0
    %655 = vdwg.mxu0
    %v656 = vmax.f32 %v650, 0.0
    %v657 = vmax.f32 %v653, 0.0
    %v658 = vpack.c.bf16 %v657, %v656
    %s659 = scalar_lea.vmem [#allocation8], 64
    %v660 = vld [vmem:[%s659] sm:$0xf]
    %v661 = vld [vmem:[%s659 + $0x4] sm:$0xf]
    %v662 = vld [vmem:[%s659 + $0x8] sm:$0xf]
    %v663 = vld [vmem:[%s659 + $0xc] sm:$0xf]
    %v664 = vld [vmem:[%s659 + $0x10] sm:$0xf]
    %v665 = vld [vmem:[%s659 + $0x14] sm:$0xf]
    %v666 = vld [vmem:[%s659 + $0x18] sm:$0xf]
    %v667 = vld [vmem:[%s659 + $0x1c] sm:$0xf]
    %v668 = vld [vmem:[%s659 + $0x20] sm:$0xf]
    %v669 = vld [vmem:[%s659 + $0x24] sm:$0xf]
    %v670 = vld [vmem:[%s659 + $0x28] sm:$0xf]
    %v671 = vld [vmem:[%s659 + $0x2c] sm:$0xf]
    %v672 = vld [vmem:[%s659 + $0x30] sm:$0xf]
    %v673 = vld [vmem:[%s659 + $0x34] sm:$0xf]
    %v674 = vld [vmem:[%s659 + $0x38] sm:$0xf]
    %v675 = vld [vmem:[%s659 + $0x3c] sm:$0xf]
    %v676 = vld [vmem:[%s6 + $0x1] sm:$0x1]
    %v677 = vlaneseq
    %v678 = vshrl.u32 %v677, 7
    %v679 = vsub.s32 0, %v678
    %v680 = vrot.slane %v676, %v679
    %v697 = vunpack.c.l.b16 %v660
    %v698 = vunpack.c.l.b16 %v661
    %v699 = vunpack.c.l.b16 %v662
    %v700 = vunpack.c.l.b16 %v663
    %v701 = vunpack.c.l.b16 %v664
    %v702 = vunpack.c.l.b16 %v665
    %v703 = vunpack.c.l.b16 %v666
    %v704 = vunpack.c.l.b16 %v667
    %v705 = vunpack.c.l.b16 %v668
    %v706 = vunpack.c.l.b16 %v669
    %v707 = vunpack.c.l.b16 %v670
    %v708 = vunpack.c.l.b16 %v671
    %v709 = vunpack.c.l.b16 %v672
    %v710 = vunpack.c.l.b16 %v673
    %v711 = vunpack.c.l.b16 %v674
    %v712 = vunpack.c.l.b16 %v675
    %v713 = vpack.c.b16 %v698, %v697
    %v714 = vpack.c.b16 %v700, %v699
    %v715 = vpack.c.b16 %v702, %v701
    %v716 = vpack.c.b16 %v704, %v703
    %v717 = vpack.c.b16 %v706, %v705
    %v718 = vpack.c.b16 %v708, %v707
    %v719 = vpack.c.b16 %v710, %v709
    %v720 = vpack.c.b16 %v712, %v711
    %729 = vmatprep.subr.bf16.mxu0 0
    %730 = vmatpush1.bf16.msra.mxu0 %v720
    %731 = vmatprep.subr.bf16.mxu0 0
    %732 = vmatpush1.bf16.msra.mxu0 %v719
    %733 = vmatprep.subr.bf16.mxu0 0
    %734 = vmatpush1.bf16.msra.mxu0 %v718
    %735 = vmatprep.subr.bf16.mxu0 0
    %736 = vmatpush1.bf16.msra.mxu0 %v717
    %737 = vmatprep.subr.bf16.mxu0 0
    %738 = vmatpush1.bf16.msra.mxu0 %v716
    %739 = vmatprep.subr.bf16.mxu0 0
    %740 = vmatpush1.bf16.msra.mxu0 %v715
    %741 = vmatprep.subr.bf16.mxu0 0
    %742 = vmatpush1.bf16.msra.mxu0 %v714
    %743 = vmatprep.subr.bf16.mxu0 0
    %744 = vmatpush1.bf16.msra.mxu0 %v713
    %745 = vmatprep.subr.bf16.mxu0 0
    %746 = vmatpush2.bf16.msra.mxu0 0
    %747 = vmatprep.subr.bf16.mxu0 0
    %748 = vmatpush2.bf16.msra.mxu0 0
    %749 = vmatprep.subr.bf16.mxu0 0
    %750 = vmatpush2.bf16.msra.mxu0 0
    %751 = vmatprep.subr.bf16.mxu0 0
    %752 = vmatpush2.bf16.msra.mxu0 0
    %753 = vmatprep.subr.bf16.mxu0 0
    %754 = vmatpush2.bf16.msra.mxu0 0
    %755 = vmatprep.subr.bf16.mxu0 0
    %756 = vmatpush2.bf16.msra.mxu0 0
    %757 = vmatprep.subr.bf16.mxu0 0
    %758 = vmatpush2.bf16.msra.mxu0 0
    %759 = vmatprep.subr.bf16.mxu0 0
    %760 = vmatpush2.bf16.msra.mxu0 0
    %761 = vmatprep.mubr.bf16.mxu0 0
    %762 = vmatmul.mubr.bf16.gmra.mxu0 %v658
    %v763 = vpop.f32.mrf.mxu0
    %v764 = vadd.f32 %v680, %v763
    %v765 = vpop.f32.mrf.mxu0
    %v766 = vpop.f32.mrf.mxu0
    %v767 = vadd.f32 %v680, %v766
    %v768 = vpop.f32.mrf.mxu0
    %769 = vdwg.mxu0
    %v770 = vadd.f32 %v764, %v428
    %v771 = vadd.f32 %v767, %v429
    %772 = vadd.xlane.f32.xlu0 %v770
    %v773 = vpop.xlane.xlu0 %772
    %774 = vadd.xlane.f32.xlu0 %v771
    %v775 = vpop.xlane.xlu0 %774
    %v776 = vmul.f32 %v773, 0.0078125
    %v777 = vmul.f32 %v775, 0.0078125
    %v778 = vsub.f32 %v770, %v776
    %v779 = vsub.f32 %v771, %v777
    %v780 = vmul.f32 %v778, %v778
    %v781 = vmul.f32 %v779, %v779
    %782 = vadd.xlane.f32.xlu0 %v780
    %v783 = vpop.xlane.xlu0 %782
    %784 = vadd.xlane.f32.xlu0 %v781
    %v785 = vpop.xlane.xlu0 %784
    %v786 = vmul.f32 %v783, 0.0078125
    %v787 = vmul.f32 %v785, 0.0078125
    %v788 = vadd.f32 %v786, 1e-05
    %v789 = vadd.f32 %v787, 1e-05
    %v790 = vrsqrt.pop %v788
    %v791 = vrsqrt.pop %v789
    %v792 = vmul.f32 %v778, %v790
    %v793 = vmul.f32 %v779, %v791
    %v794 = vld [vmem:[%s7] sm:$0x1]
    %v796 = vlaneseq
    %v797 = vshrl.u32 %v796, 7
    %v798 = vsub.s32 0, %v797
    %v799 = vrot.slane %v794, %v798
    %v801 = vmul.f32 %v792, %v799
    %v802 = vmul.f32 %v793, %v799
    %v803 = vld [vmem:[%s8] sm:$0x1]
    %v805 = vlaneseq
    %v806 = vshrl.u32 %v805, 7
    %v807 = vsub.s32 0, %v806
    %v808 = vrot.slane %v803, %v807
    %v810 = vadd.f32 %v801, %v808
    %v811 = vadd.f32 %v802, %v808
    %812 = vst [vmem:[#allocation10] sm:$0xff] %v810
    %813 = vst [vmem:[#allocation10 + $0x8] sm:$0xff] %v811
    // Predicated region
    $region54: #{tpu_custom_call.1} parent=1 // pred_check
      _
    $region55: #{tpu_custom_call.1} parent=1 // pred_check_branch
      %815 = sbr.rel (0) target = $region57
    $region56: #{tpu_custom_call.1} parent=1 // pred_region
      %s817 = ssub.s32 256, 256
      %818 = vsyncadd [#allocation4], %s817
      %s819 = sshll.u32 [#allocation10], 4
      %s820 = int_to_ptr.vmem [resolvable:$true] %s819
      %825 = dma.vmem_to_hbm [thread:$0]  %s820, 256, %s9, [#allocation4], 128, 128, 8
    $region57: #{tpu_custom_call.1} parent=1 // pred_fallthru
      _
    // Predicated region
    $region58: #{tpu_custom_call.1} parent=1 // pred_check
      _
    $region59: #{tpu_custom_call.1} parent=1 // pred_check_branch
      %827 = sbr.rel (0) target = $region61
    $region60: #{tpu_custom_call.1} parent=1 // pred_region
      %828 = dma.done [#allocation4], 256
    $region61: #{tpu_custom_call.1} parent=1 // pred_fallthru
      _
    %829 = vsyncpa [#allocation3], 1
    %830 = vsyncpa [#allocation6], 1
    %831 = vsyncpa [#allocation9], 1
    %832 = vsyncpa [#allocation4], 1

</llo_original>
